<compile_context>
chip_gen: v7x
topology: tpu7x:2x2x1
jax: 0.10.0
libtpu: 0.0.40
codegen_flags: <defaults>
</compile_context>

<pallas_src>
import functools

import jax
import jax.numpy as jnp
from jax import lax
from jax.experimental import pallas as pl
from jax.experimental.pallas import tpu as pltpu


LANE = 128


def _round_up(n, m):
    return ((n + m - 1) // m) * m


def _pick_hw_tile(hw):
    # Largest spatial tile (multiple of 16 sublanes, bf16-friendly) dividing HW.
    # Tiles are small enough that 2x double-buffered patch tiles stay far below the
    # scoped VMEM limit on every generation (including v7x's 64 MiB physical VMEM).
    for t in (1024, 512, 256, 128, 64, 32, 16):
        if hw % t == 0:
            return t
    return hw  # demo shapes always hit a candidate above


# ---------------------------------------------------------------------------
# Kernel 1: backbone = conv-as-matmul (bf16 MXU) + bias + ReLU + avg-pool accumulate
# ---------------------------------------------------------------------------
def _backbone_kernel(patches_ref, wc_ref, bc_ref, feat_ref, acc_ref, *, inv_hw):
    """One (batch b, spatial-tile k) grid step.

    patches_ref: [HW_TILE, CKK]  bf16   (rows of image b, spatial tile k)
    wc_ref:      [CKK, F_PAD]    bf16
    bc_ref:      [1, F_PAD]      f32
    feat_ref:    [1, 1, F_PAD]   f32    (output block for image b, resident over k)
    acc_ref:     [1, F_PAD]      f32    (VMEM scratch: running spatial sum)
    """
    k = pl.program_id(1)

    @pl.when(k == 0)
    def _init():
        acc_ref[...] = jnp.zeros_like(acc_ref)

    # MXU matmul, bf16 inputs with f32 accumulation; bias + ReLU + pool in f32.
    h = jnp.dot(patches_ref[...], wc_ref[...],
                preferred_element_type=jnp.float32)
    h = jnp.maximum(h + bc_ref[...], 0.0)
    acc_ref[...] += jnp.sum(h, axis=0, keepdims=True)

    @pl.when(k == pl.num_programs(1) - 1)
    def _finalize():
        feat_ref[0] = acc_ref[...] * inv_hw


# ---------------------------------------------------------------------------
# Kernel 2: head = backbone linear head + aux_classifier + BatchNorm1d (train mode)
# ---------------------------------------------------------------------------
def _head_kernel(feat_ref, wh_ref, bh_ref, wa_ref, ba_ref, gamma_ref, beta_ref,
                 out_ref, *, nc_pad, f_pad):
    f = feat_ref[...]                                   # [B, F_PAD] f32
    logits = jnp.dot(f, wh_ref[...], preferred_element_type=jnp.float32) + bh_ref[...]
    logits_aux = jnp.dot(f, wa_ref[...], preferred_element_type=jnp.float32) + ba_ref[...]

    # nn.BatchNorm1d training-mode: batch mean, biased batch variance, eps=1e-5.
    # TODO(synk): running_mean/running_var buffer updates are not modeled.
    mean = jnp.mean(f, axis=0, keepdims=True)
    var = jnp.mean((f - mean) ** 2, axis=0, keepdims=True)
    inv = lax.rsqrt(var + 1e-5)
    feat_bn = (f - mean) * inv * gamma_ref[...] + beta_ref[...]

    # Single lane-dense packed output slab: [logits | logits_aux | feat_bn].
    out_ref[:, 0:nc_pad] = logits
    out_ref[:, nc_pad:2 * nc_pad] = logits_aux
    out_ref[:, 2 * nc_pad:2 * nc_pad + f_pad] = feat_bn


def _pad_to(a, shape, dtype):
    out = jnp.zeros(shape, dtype)
    return out.at[tuple(slice(0, s) for s in a.shape)].set(a.astype(dtype))


@jax.jit
def adnet_forward(x, params):
    """x: [B, C, H, W] float32 (NCHW, like PyTorch). Returns dict of outputs."""
    B, C, H, W = x.shape
    K = 3
    HW = H * W
    CKK = C * K * K
    F = params["w_conv"].shape[1]
    NC = params["w_head"].shape[1]
    F_PAD = _round_up(F, LANE)
    NC_PAD = _round_up(NC, LANE)

    # --- glue: im2col (3x3, pad=1, stride=1) in bf16, flattened to [B*HW, CKK] ---
    # TODO(synk): a further step is to stream the padded NHWC input and do 9 shifted
    # matmul accumulations in-kernel instead of materialising the 9x im2col in HBM.
    xb = x.astype(jnp.bfloat16)
    xp = jnp.pad(xb, ((0, 0), (0, 0), (1, 1), (1, 1)))
    taps = [xp[:, :, dh:dh + H, dw:dw + W] for dh in range(K) for dw in range(K)]
    patches = jnp.stack(taps, axis=2)                       # [B, C, 9, H, W]
    patches = patches.transpose(0, 3, 4, 1, 2).reshape(B * HW, CKK)

    # lane-dense (feature axis padded to 128) bf16 conv weights, f32 bias
    wc = _pad_to(params["w_conv"], (CKK, F_PAD), jnp.bfloat16)
    bc = _pad_to(params["b_conv"], (1, F_PAD), jnp.float32)

    hw_tile = _pick_hw_tile(HW)
    n_hw = HW // hw_tile
    grid = (B, n_hw)

    # --- Pallas kernel 1: tiled conv(matmul) + relu + global-avg-pool accumulate ---
    feat_pad = pl.pallas_call(
        functools.partial(_backbone_kernel, inv_hw=1.0 / HW),
        out_shape=jax.ShapeDtypeStruct((B, 1, F_PAD), jnp.float32),
        grid_spec=pltpu.PrefetchScalarGridSpec(
            num_scalar_prefetch=0,
            grid=grid,
            in_specs=[
                pl.BlockSpec((hw_tile, CKK), lambda b, k: (b * n_hw + k, 0)),
                pl.BlockSpec((CKK, F_PAD), lambda b, k: (0, 0)),
                pl.BlockSpec((1, F_PAD), lambda b, k: (0, 0)),
            ],
            out_specs=pl.BlockSpec((1, 1, F_PAD), lambda b, k: (b, 0, 0)),
            scratch_shapes=[pltpu.VMEM((1, F_PAD), jnp.float32)],
        ),
        compiler_params=pltpu.CompilerParams(
            dimension_semantics=("parallel", "arbitrary"),
            vmem_limit_bytes=32 * 1024 * 1024,
        ),
        cost_estimate=pl.CostEstimate(
            flops=2 * B * HW * CKK * F_PAD,
            transcendentals=0,
            bytes_accessed=int(patches.size * 2 + wc.size * 2
                               + bc.size * 4 + B * F_PAD * 4),
        ),
    )(patches, wc, bc)
    feat_pad = feat_pad.reshape(B, F_PAD)

    # --- Pallas kernel 2: logits + logits_aux + feat_bn (whole batch, packed out) ---
    wh = _pad_to(params["w_head"], (F_PAD, NC_PAD), jnp.float32)
    bh = _pad_to(params["b_head"], (1, NC_PAD), jnp.float32)
    wa = _pad_to(params["w_aux"], (F_PAD, NC_PAD), jnp.float32)
    ba = _pad_to(params["b_aux"], (1, NC_PAD), jnp.float32)
    gamma = _pad_to(params["gamma"], (1, F_PAD), jnp.float32)
    beta = _pad_to(params["beta"], (1, F_PAD), jnp.float32)

    packed_width = 2 * NC_PAD + F_PAD
    vmem = pl.BlockSpec(memory_space=pltpu.MemorySpace.VMEM)
    packed = pl.pallas_call(
        functools.partial(_head_kernel, nc_pad=NC_PAD, f_pad=F_PAD),
        out_shape=jax.ShapeDtypeStruct((B, packed_width), jnp.float32),
        in_specs=[vmem] * 7,
        out_specs=vmem,
        compiler_params=pltpu.CompilerParams(
            vmem_limit_bytes=32 * 1024 * 1024,
        ),
        cost_estimate=pl.CostEstimate(
            flops=4 * B * F_PAD * NC_PAD + 10 * B * F_PAD,
            transcendentals=F_PAD,
            bytes_accessed=int((feat_pad.size + wh.size + wa.size + bh.size
                                + ba.size + gamma.size + beta.size
                                + B * packed_width) * 4),
        ),
    )(feat_pad, wh, bh, wa, ba, gamma, beta)

    return {
        "logits": packed[:, 0:NC],
        "feat": feat_pad[:, 0:F],
        "logits_aux": packed[:, NC_PAD:NC_PAD + NC],
        "feat_bn": packed[:, 2 * NC_PAD:2 * NC_PAD + F],
    }


def init_params(key, c_in=4, num_features=32, num_classes=8, k=3):
    ks = jax.random.split(key, 6)
    ckk = c_in * k * k
    scale_c = 1.0 / jnp.sqrt(ckk)
    scale_f = 1.0 / jnp.sqrt(num_features)
    return {
        # conv weight reshaped to matmul form [C*K*K, F]
        "w_conv": jax.random.uniform(ks[0], (ckk, num_features), jnp.float32,
                                     -scale_c, scale_c),
        "b_conv": jax.random.uniform(ks[1], (1, num_features), jnp.float32,
                                     -scale_c, scale_c),
        # backbone linear head [F, num_classes]
        "w_head": jax.random.uniform(ks[2], (num_features, num_classes),
                                     jnp.float32, -scale_f, scale_f),
        "b_head": jax.random.uniform(ks[3], (1, num_classes), jnp.float32,
                                     -scale_f, scale_f),
        # ADNet aux_classifier = nn.Linear(num_features, num_classes)
        "w_aux": jax.random.uniform(ks[4], (num_features, num_classes),
                                    jnp.float32, -scale_f, scale_f),
        "b_aux": jax.random.uniform(ks[5], (1, num_classes), jnp.float32,
                                    -scale_f, scale_f),
        # ADNet bn = nn.BatchNorm1d(num_features): gamma=1, beta=0 at init
        "gamma": jnp.ones((1, num_features), jnp.float32),
        "beta": jnp.zeros((1, num_features), jnp.float32),
    }


def reference_forward(x, params):
    """Pure-JAX reference (same bf16 conv-matmul precision) for a sanity check."""
    B, C, H, W = x.shape
    K = 3
    HW = H * W
    xb = x.astype(jnp.bfloat16)
    xp = jnp.pad(xb, ((0, 0), (0, 0), (1, 1), (1, 1)))
    taps = [xp[:, :, dh:dh + H, dw:dw + W] for dh in range(K) for dw in range(K)]
    patches = jnp.stack(taps, axis=2).transpose(0, 3, 4, 1, 2).reshape(B, HW, C * K * K)
    h = jnp.einsum("bpk,kf->bpf", patches, params["w_conv"].astype(jnp.bfloat16),
                   preferred_element_type=jnp.float32)
    h = jnp.maximum(h + params["b_conv"][None], 0.0)
    feat = jnp.mean(h, axis=1)
    logits = feat @ params["w_head"] + params["b_head"]
    logits_aux = feat @ params["w_aux"] + params["b_aux"]
    mean = jnp.mean(feat, axis=0, keepdims=True)
    var = jnp.mean((feat - mean) ** 2, axis=0, keepdims=True)
    feat_bn = (feat - mean) * lax.rsqrt(var + 1e-5) * params["gamma"] + params["beta"]
    return {"logits": logits, "feat": feat,
            "logits_aux": logits_aux, "feat_bn": feat_bn}


if __name__ == "__main__":
    key = jax.random.PRNGKey(0)
    kx, kp = jax.random.split(key)
    B, C, H, W = 2, 4, 16, 16
    x = jax.random.normal(kx, (B, C, H, W), jnp.float32)
    params = init_params(kp, c_in=C, num_features=32, num_classes=8)

    out = adnet_forward(x, params)
    jax.block_until_ready(out)

    assert out["logits"].shape == (B, 8)
    assert out["logits_aux"].shape == (B, 8)
    assert out["feat"].shape == (B, 32)
    assert out["feat_bn"].shape == (B, 32)

    ref = reference_forward(x, params)
    for name in ("feat", "logits", "logits_aux", "feat_bn"):
        assert bool(jnp.allclose(out[name], ref[name], rtol=2e-2, atol=2e-2)), name

    print("KERNEL_OK")
</pallas_src>

<mosaic_0001>
module attributes {stable_mosaic.version = 11 : i64} {
  func.func @_backbone_kernel(%arg0: i32, %arg1: i32, %arg2: memref<256x36xbf16, #tpu.memory_space<vmem>>, %arg3: memref<36x128xbf16, #tpu.memory_space<vmem>>, %arg4: memref<1x128xf32, #tpu.memory_space<vmem>>, %arg5: memref<1x1x128xf32, #tpu.memory_space<vmem>>, %arg6: memref<1x128xf32, #tpu.memory_space<vmem>>) attributes {dimension_semantics = [#tpu.dimension_semantics<parallel>, #tpu.dimension_semantics<arbitrary>], iteration_bounds = array<i64: 2, 1>, scalar_prefetch = 0 : i64, scratch_operands = 1 : i64, tpu.core_type = #tpu.core_type<tc>, window_params = [{transform_indices = @transform_0, window_bounds = array<i64: 256, 36>}, {pipeline_mode = #tpu.pipeline_mode<synchronous>, transform_indices = @transform_1, window_bounds = array<i64: 36, 128>}, {pipeline_mode = #tpu.pipeline_mode<synchronous>, transform_indices = @transform_2, window_bounds = array<i64: 1, 128>}, {transform_indices = @transform_3, window_bounds = array<i64: 1, 1, 128>}]} {
    %c0_i32 = arith.constant 0 : i32
    %0 = arith.cmpi eq, %arg1, %c0_i32 : i32
    %1 = arith.extui %0 : i1 to i32
    %c0_i32_0 = arith.constant 0 : i32
    %2 = arith.cmpi ne, %1, %c0_i32_0 : i32
    scf.if %2 {
      %cst_14 = arith.constant 0.000000e+00 : f32
      %19 = vector.broadcast %cst_14 : f32 to vector<1x128xf32>
      %c0_15 = arith.constant 0 : index
      %c0_16 = arith.constant 0 : index
      %20 = vector.load %arg6[%c0_15, %c0_16] : memref<1x128xf32, #tpu.memory_space<vmem>>, vector<1x128xf32>
      tpu.vector_store %arg6[%c0_15, %c0_16], %19 {strides = array<i32>} : memref<1x128xf32, #tpu.memory_space<vmem>>, vector<1x128xf32>,
    } else {
    }
    %c0 = arith.constant 0 : index
    %c0_1 = arith.constant 0 : index
    %3 = vector.load %arg2[%c0, %c0_1] : memref<256x36xbf16, #tpu.memory_space<vmem>>, vector<256x36xbf16>
    %c0_2 = arith.constant 0 : index
    %c0_3 = arith.constant 0 : index
    %4 = vector.load %arg3[%c0_2, %c0_3] : memref<36x128xbf16, #tpu.memory_space<vmem>>, vector<36x128xbf16>
    %cst = arith.constant dense<0.000000e+00> : vector<256x128xf32>
    %5 = tpu.matmul %3, %4, %cst {dimension_numbers = #tpu.dot_dimension_numbers<[1], [0], [0], [1], [0, 0, 1, 1], [], []>} : vector<256x36xbf16>, vector<36x128xbf16>, vector<256x128xf32> -> vector<256x128xf32>
    %c0_4 = arith.constant 0 : index
    %c0_5 = arith.constant 0 : index
    %6 = vector.load %arg4[%c0_4, %c0_5] : memref<1x128xf32, #tpu.memory_space<vmem>>, vector<1x128xf32>
    %7 = vector.broadcast %6 : vector<1x128xf32> to vector<256x128xf32>
    %8 = arith.addf %5, %7 : vector<256x128xf32>
    %cst_6 = arith.constant 0.000000e+00 : f32
    %9 = vector.broadcast %cst_6 : f32 to vector<256x128xf32>
    %10 = arith.maximumf %8, %9 : vector<256x128xf32>
    %c0_7 = arith.constant 0 : index
    %c0_8 = arith.constant 0 : index
    %11 = vector.load %arg6[%c0_7, %c0_8] : memref<1x128xf32, #tpu.memory_space<vmem>>, vector<1x128xf32>
    %cst_9 = arith.constant dense<0.000000e+00> : vector<128xf32>
    %12 = vector.multi_reduction <add>, %10, %cst_9 [0] : vector<256x128xf32> to vector<128xf32>
    %13 = vector.shape_cast %12 : vector<128xf32> to vector<1x128xf32>
    %14 = arith.addf %11, %13 : vector<1x128xf32>
    %c0_10 = arith.constant 0 : index
    %c0_11 = arith.constant 0 : index
    %15 = vector.load %arg6[%c0_10, %c0_11] : memref<1x128xf32, #tpu.memory_space<vmem>>, vector<1x128xf32>
    tpu.vector_store %arg6[%c0_10, %c0_11], %14 {strides = array<i32>} : memref<1x128xf32, #tpu.memory_space<vmem>>, vector<1x128xf32>,
    %c0_i32_12 = arith.constant 0 : i32
    %16 = arith.cmpi eq, %arg1, %c0_i32_12 : i32
    %17 = arith.extui %16 : i1 to i32
    %c0_i32_13 = arith.constant 0 : i32
    %18 = arith.cmpi ne, %17, %c0_i32_13 : i32
    scf.if %18 {
      %c0_14 = arith.constant 0 : index
      %c0_15 = arith.constant 0 : index
      %19 = vector.load %arg6[%c0_14, %c0_15] : memref<1x128xf32, #tpu.memory_space<vmem>>, vector<1x128xf32>
      %cst_16 = arith.constant 3.906250e-03 : f32
      %20 = vector.broadcast %cst_16 : f32 to vector<1x128xf32>
      %21 = arith.mulf %19, %20 : vector<1x128xf32>
      %c0_17 = arith.constant 0 : index
      %c0_18 = arith.constant 0 : index
      %c0_19 = arith.constant 0 : index
      %22 = vector.load %arg5[%c0_17, %c0_18, %c0_19] : memref<1x1x128xf32, #tpu.memory_space<vmem>>, vector<1x1x128xf32>
      %23 = vector.shape_cast %22 : vector<1x1x128xf32> to vector<1x128xf32>
      %24 = vector.shape_cast %21 : vector<1x128xf32> to vector<1x1x128xf32>
      tpu.vector_store %arg5[%c0_17, %c0_18, %c0_19], %24 {strides = array<i32>} : memref<1x1x128xf32, #tpu.memory_space<vmem>>, vector<1x1x128xf32>,
    } else {
    }
    return
  }
  func.func @transform_0(%arg0: i32, %arg1: i32) -> (i32, i32) {
    %c1_i32 = arith.constant 1 : i32
    %0 = arith.muli %arg0, %c1_i32 : i32
    %1 = arith.addi %0, %arg1 : i32
    %c0_i32 = arith.constant 0 : i32
    %c0_i32_0 = arith.constant 0 : i32
    return %1, %c0_i32 : i32, i32
  }
  func.func @transform_1(%arg0: i32, %arg1: i32) -> (i32, i32) {
    %c0_i32 = arith.constant 0 : i32
    %c0_i32_0 = arith.constant 0 : i32
    %c0_i32_1 = arith.constant 0 : i32
    return %c0_i32, %c0_i32_0 : i32, i32
  }
  func.func @transform_2(%arg0: i32, %arg1: i32) -> (i32, i32) {
    %c0_i32 = arith.constant 0 : i32
    %c0_i32_0 = arith.constant 0 : i32
    %c0_i32_1 = arith.constant 0 : i32
    return %c0_i32, %c0_i32_0 : i32, i32
  }
  func.func @transform_3(%arg0: i32, %arg1: i32) -> (i32, i32, i32) {
    %c0_i32 = arith.constant 0 : i32
    %c0_i32_0 = arith.constant 0 : i32
    %c0_i32_1 = arith.constant 0 : i32
    return %arg0, %c0_i32, %c0_i32_0 : i32, i32, i32
  }
}

module attributes {stable_mosaic.version = 11 : i64} {
  func.func @_head_kernel(%arg0: memref<2x128xf32, #tpu.memory_space<vmem>>, %arg1: memref<128x128xf32, #tpu.memory_space<vmem>>, %arg2: memref<1x128xf32, #tpu.memory_space<vmem>>, %arg3: memref<128x128xf32, #tpu.memory_space<vmem>>, %arg4: memref<1x128xf32, #tpu.memory_space<vmem>>, %arg5: memref<1x128xf32, #tpu.memory_space<vmem>>, %arg6: memref<1x128xf32, #tpu.memory_space<vmem>>, %arg7: memref<2x384xf32, #tpu.memory_space<vmem>>) attributes {dimension_semantics = [], scalar_prefetch = 0 : i64, scratch_operands = 0 : i64, tpu.core_type = #tpu.core_type<tc>} {
    %c0 = arith.constant 0 : index
    %c0_0 = arith.constant 0 : index
    %0 = vector.load %arg0[%c0, %c0_0] : memref<2x128xf32, #tpu.memory_space<vmem>>, vector<2x128xf32>
    %c0_1 = arith.constant 0 : index
    %c0_2 = arith.constant 0 : index
    %1 = vector.load %arg1[%c0_1, %c0_2] : memref<128x128xf32, #tpu.memory_space<vmem>>, vector<128x128xf32>
    %cst = arith.constant dense<0.000000e+00> : vector<2x128xf32>
    %2 = tpu.matmul %0, %1, %cst {dimension_numbers = #tpu.dot_dimension_numbers<[1], [0], [0], [1], [0, 0, 1, 1], [], []>} : vector<2x128xf32>, vector<128x128xf32>, vector<2x128xf32> -> vector<2x128xf32>
    %c0_3 = arith.constant 0 : index
    %c0_4 = arith.constant 0 : index
    %3 = vector.load %arg2[%c0_3, %c0_4] : memref<1x128xf32, #tpu.memory_space<vmem>>, vector<1x128xf32>
    %4 = vector.broadcast %3 : vector<1x128xf32> to vector<2x128xf32>
    %5 = arith.addf %2, %4 : vector<2x128xf32>
    %c0_5 = arith.constant 0 : index
    %c0_6 = arith.constant 0 : index
    %6 = vector.load %arg3[%c0_5, %c0_6] : memref<128x128xf32, #tpu.memory_space<vmem>>, vector<128x128xf32>
    %cst_7 = arith.constant dense<0.000000e+00> : vector<2x128xf32>
    %7 = tpu.matmul %0, %6, %cst_7 {dimension_numbers = #tpu.dot_dimension_numbers<[1], [0], [0], [1], [0, 0, 1, 1], [], []>} : vector<2x128xf32>, vector<128x128xf32>, vector<2x128xf32> -> vector<2x128xf32>
    %c0_8 = arith.constant 0 : index
    %c0_9 = arith.constant 0 : index
    %8 = vector.load %arg4[%c0_8, %c0_9] : memref<1x128xf32, #tpu.memory_space<vmem>>, vector<1x128xf32>
    %9 = vector.broadcast %8 : vector<1x128xf32> to vector<2x128xf32>
    %10 = arith.addf %7, %9 : vector<2x128xf32>
    %cst_10 = arith.constant dense<0.000000e+00> : vector<128xf32>
    %11 = vector.multi_reduction <add>, %0, %cst_10 [0] : vector<2x128xf32> to vector<128xf32>
    %12 = vector.shape_cast %11 : vector<128xf32> to vector<1x128xf32>
    %cst_11 = arith.constant 2.000000e+00 : f32
    %13 = vector.broadcast %cst_11 : f32 to vector<1x128xf32>
    %14 = arith.divf %12, %13 : vector<1x128xf32>
    %15 = vector.broadcast %14 : vector<1x128xf32> to vector<2x128xf32>
    %16 = arith.subf %0, %15 : vector<2x128xf32>
    %17 = arith.mulf %16, %16 : vector<2x128xf32>
    %cst_12 = arith.constant dense<0.000000e+00> : vector<128xf32>
    %18 = vector.multi_reduction <add>, %17, %cst_12 [0] : vector<2x128xf32> to vector<128xf32>
    %19 = vector.shape_cast %18 : vector<128xf32> to vector<1x128xf32>
    %cst_13 = arith.constant 2.000000e+00 : f32
    %20 = vector.broadcast %cst_13 : f32 to vector<1x128xf32>
    %21 = arith.divf %19, %20 : vector<1x128xf32>
    %cst_14 = arith.constant 9.99999974E-6 : f32
    %22 = vector.broadcast %cst_14 : f32 to vector<1x128xf32>
    %23 = arith.addf %21, %22 : vector<1x128xf32>
    %24 = math.rsqrt %23 : vector<1x128xf32>
    %25 = vector.broadcast %14 : vector<1x128xf32> to vector<2x128xf32>
    %26 = arith.subf %0, %25 : vector<2x128xf32>
    %27 = vector.broadcast %24 : vector<1x128xf32> to vector<2x128xf32>
    %28 = arith.mulf %26, %27 : vector<2x128xf32>
    %c0_15 = arith.constant 0 : index
    %c0_16 = arith.constant 0 : index
    %29 = vector.load %arg5[%c0_15, %c0_16] : memref<1x128xf32, #tpu.memory_space<vmem>>, vector<1x128xf32>
    %30 = vector.broadcast %29 : vector<1x128xf32> to vector<2x128xf32>
    %31 = arith.mulf %28, %30 : vector<2x128xf32>
    %c0_17 = arith.constant 0 : index
    %c0_18 = arith.constant 0 : index
    %32 = vector.load %arg6[%c0_17, %c0_18] : memref<1x128xf32, #tpu.memory_space<vmem>>, vector<1x128xf32>
    %33 = vector.broadcast %32 : vector<1x128xf32> to vector<2x128xf32>
    %34 = arith.addf %31, %33 : vector<2x128xf32>
    %c0_19 = arith.constant 0 : index
    %c0_20 = arith.constant 0 : index
    %35 = vector.load %arg7[%c0_19, %c0_20] : memref<2x384xf32, #tpu.memory_space<vmem>>, vector<2x128xf32>
    tpu.vector_store %arg7[%c0_19, %c0_20], %5 {strides = array<i32>} : memref<2x384xf32, #tpu.memory_space<vmem>>, vector<2x128xf32>,
    %c0_21 = arith.constant 0 : index
    %c128 = arith.constant 128 : index
    %36 = vector.load %arg7[%c0_21, %c128] : memref<2x384xf32, #tpu.memory_space<vmem>>, vector<2x128xf32>
    tpu.vector_store %arg7[%c0_21, %c128], %10 {strides = array<i32>} : memref<2x384xf32, #tpu.memory_space<vmem>>, vector<2x128xf32>,
    %c0_22 = arith.constant 0 : index
    %c256 = arith.constant 256 : index
    %37 = vector.load %arg7[%c0_22, %c256] : memref<2x384xf32, #tpu.memory_space<vmem>>, vector<2x128xf32>
    tpu.vector_store %arg7[%c0_22, %c256], %34 {strides = array<i32>} : memref<2x384xf32, #tpu.memory_space<vmem>>, vector<2x128xf32>,
    return
  }
}

</mosaic_0001>

<llo_original>
// kernel: adnet_forward.3
$region0: #{adnet_forward.3}
  #allocation0 [shape = 'u32[]', space=smem, size = 0x4, offset = 0x4, fixed_abs, tag = 'smem constant byte address 0x4 - core index']
  #allocation1 [shape = 'u32[144,128]{1,0:T(1,128)}', space=vmem, size = 0x12000, scoped, tag = 'internal scratch']
  %s0 = inlined_call_operand.vmem [shape: f32[2,128], index: 0, kind: input, shape index: {}]
  %s1 = inlined_call_operand.vmem [shape: f32[128,128], index: 1, kind: input, shape index: {}]
  %s2 = inlined_call_operand.vmem [shape: f32[1,128], index: 2, kind: input, shape index: {}]
  %s3 = inlined_call_operand.vmem [shape: f32[128,128], index: 3, kind: input, shape index: {}]
  %s4 = inlined_call_operand.vmem [shape: f32[1,128], index: 4, kind: input, shape index: {}]
  %s5 = inlined_call_operand.vmem [shape: f32[1,128], index: 5, kind: input, shape index: {}]
  %s6 = inlined_call_operand.vmem [shape: f32[1,128], index: 6, kind: input, shape index: {}]
  %s7 = inlined_call_operand.vmem [shape: f32[2,384], index: 7, kind: output, shape index: {}]
  %s8 = sld [smem:[#allocation0]]
  $region38: #{adnet_forward.3} parent=0
    _
  %s10 = ssub.s32 1, %s8
  %s11 = scalar_select 0, %s10, %s8
  // Predicated region
  $region2: #{adnet_forward.3} parent=0 // pred_check
    _
  $region3: #{adnet_forward.3} parent=0 // pred_check_branch
    %13 = sbr.rel (0) target = $region5
  $region4: #{adnet_forward.3} parent=0 // pred_region
    _
  $region5: #{adnet_forward.3} parent=0 // pred_fallthru
    _
  // Predicated region
  $region6: #{adnet_forward.3} parent=0 // pred_check
    _
  $region7: #{adnet_forward.3} parent=0 // pred_check_branch
    %15 = sbr.rel (0) target = $region9
  $region8: #{adnet_forward.3} parent=0 // pred_region
    _
  $region9: #{adnet_forward.3} parent=0 // pred_fallthru
    _
  // Predicated region
  $region10: #{adnet_forward.3} parent=0 // pred_check
    _
  $region11: #{adnet_forward.3} parent=0 // pred_check_branch
    %17 = sbr.rel (0) target = $region13
  $region12: #{adnet_forward.3} parent=0 // pred_region
    _
  $region13: #{adnet_forward.3} parent=0 // pred_fallthru
    _
  // Predicated region
  $region14: #{adnet_forward.3} parent=0 // pred_check
    _
  $region15: #{adnet_forward.3} parent=0 // pred_check_branch
    %19 = sbr.rel (0) target = $region17
  $region16: #{adnet_forward.3} parent=0 // pred_region
    _
  $region17: #{adnet_forward.3} parent=0 // pred_fallthru
    _
  // Predicated region
  $region18: #{adnet_forward.3} parent=0 // pred_check
    _
  $region19: #{adnet_forward.3} parent=0 // pred_check_branch
    %21 = sbr.rel (0) target = $region21
  $region20: #{adnet_forward.3} parent=0 // pred_region
    _
  $region21: #{adnet_forward.3} parent=0 // pred_fallthru
    _
  // Predicated region
  $region22: #{adnet_forward.3} parent=0 // pred_check
    _
  $region23: #{adnet_forward.3} parent=0 // pred_check_branch
    %23 = sbr.rel (0) target = $region25
  $region24: #{adnet_forward.3} parent=0 // pred_region
    _
  $region25: #{adnet_forward.3} parent=0 // pred_fallthru
    _
  // Predicated region
  $region26: #{adnet_forward.3} parent=0 // pred_check
    _
  $region27: #{adnet_forward.3} parent=0 // pred_check_branch
    %25 = sbr.rel (0) target = $region29
  $region28: #{adnet_forward.3} parent=0 // pred_region
    _
  $region29: #{adnet_forward.3} parent=0 // pred_fallthru
    _
  %v26 = vld [vmem:[%s0] sm:$0x3]
  %v27 = vld [vmem:[%s1] sm:$0xff]
  %v28 = vld [vmem:[%s1 + $0x8] sm:$0xff]
  %v29 = vld [vmem:[%s1 + $0x10] sm:$0xff]
  %v30 = vld [vmem:[%s1 + $0x18] sm:$0xff]
  %v31 = vld [vmem:[%s1 + $0x20] sm:$0xff]
  %v32 = vld [vmem:[%s1 + $0x28] sm:$0xff]
  %v33 = vld [vmem:[%s1 + $0x30] sm:$0xff]
  %v34 = vld [vmem:[%s1 + $0x38] sm:$0xff]
  %v35 = vld [vmem:[%s1 + $0x40] sm:$0xff]
  %v36 = vld [vmem:[%s1 + $0x48] sm:$0xff]
  %v37 = vld [vmem:[%s1 + $0x50] sm:$0xff]
  %v38 = vld [vmem:[%s1 + $0x58] sm:$0xff]
  %v39 = vld [vmem:[%s1 + $0x60] sm:$0xff]
  %v40 = vld [vmem:[%s1 + $0x68] sm:$0xff]
  %v41 = vld [vmem:[%s1 + $0x70] sm:$0xff]
  %v42 = vld [vmem:[%s1 + $0x78] sm:$0xff]
  %v43 = vld [vmem:[%s2] sm:$0x1]
  %v45 = vlaneseq
  %v46 = vshrl.u32 %v45, 7
  %v47 = vsub.s32 0, %v46
  %v48 = vrot.slane %v43, %v47
  %50 = vmatprep.subr.mxu0 0.0
  %51 = vmatpush1.msra.mxu0 %v27
  %52 = vmatprep.subr.mxu0 0.0
  %53 = vmatpush1.msra.mxu0 %v28
  %54 = vmatprep.subr.mxu0 0.0
  %55 = vmatpush1.msra.mxu0 %v29
  %56 = vmatprep.subr.mxu0 0.0
  %57 = vmatpush1.msra.mxu0 %v30
  %58 = vmatprep.subr.mxu0 0.0
  %59 = vmatpush1.msra.mxu0 %v31
  %60 = vmatprep.subr.mxu0 0.0
  %61 = vmatpush1.msra.mxu0 %v32
  %62 = vmatprep.subr.mxu0 0.0
  %63 = vmatpush1.msra.mxu0 %v33
  %64 = vmatprep.subr.mxu0 0.0
  %65 = vmatpush1.msra.mxu0 %v34
  %66 = vmatprep.subr.mxu0 0.0
  %67 = vmatpush1.msra.mxu0 %v35
  %68 = vmatprep.subr.mxu0 0.0
  %69 = vmatpush1.msra.mxu0 %v36
  %70 = vmatprep.subr.mxu0 0.0
  %71 = vmatpush1.msra.mxu0 %v37
  %72 = vmatprep.subr.mxu0 0.0
  %73 = vmatpush1.msra.mxu0 %v38
  %74 = vmatprep.subr.mxu0 0.0
  %75 = vmatpush1.msra.mxu0 %v39
  %76 = vmatprep.subr.mxu0 0.0
  %77 = vmatpush1.msra.mxu0 %v40
  %78 = vmatprep.subr.mxu0 0.0
  %79 = vmatpush1.msra.mxu0 %v41
  %80 = vmatprep.subr.mxu0 0.0
  %81 = vmatpush1.msra.mxu0 %v42
  %82 = vmatprep.subr.mxu0 0.0
  %83 = vmatpush1.msra.mxu0 0.0
  %84 = vmatprep.subr.mxu0 0.0
  %85 = vmatpush1.msra.mxu0 0.0
  %86 = vmatprep.subr.mxu0 0.0
  %87 = vmatpush1.msra.mxu0 0.0
  %88 = vmatprep.subr.mxu0 0.0
  %89 = vmatpush1.msra.mxu0 0.0
  %90 = vmatprep.subr.mxu0 0.0
  %91 = vmatpush1.msra.mxu0 0.0
  %92 = vmatprep.subr.mxu0 0.0
  %93 = vmatpush1.msra.mxu0 0.0
  %94 = vmatprep.subr.mxu0 0.0
  %95 = vmatpush1.msra.mxu0 0.0
  %96 = vmatprep.subr.mxu0 0.0
  %97 = vmatpush1.msra.mxu0 0.0
  %98 = vmatprep.subr.mxu0 0.0
  %99 = vmatpush1.msra.mxu0 0.0
  %100 = vmatprep.subr.mxu0 0.0
  %101 = vmatpush1.msra.mxu0 0.0
  %102 = vmatprep.subr.mxu0 0.0
  %103 = vmatpush1.msra.mxu0 0.0
  %104 = vmatprep.subr.mxu0 0.0
  %105 = vmatpush1.msra.mxu0 0.0
  %106 = vmatprep.subr.mxu0 0.0
  %107 = vmatpush1.msra.mxu0 0.0
  %108 = vmatprep.subr.mxu0 0.0
  %109 = vmatpush1.msra.mxu0 0.0
  %110 = vmatprep.subr.mxu0 0.0
  %111 = vmatpush1.msra.mxu0 0.0
  %112 = vmatprep.subr.mxu0 0.0
  %113 = vmatpush1.msra.mxu0 0.0
  %114 = vmatprep.mubr.f32.mxu0 0.0
  %115 = vmatmul.mubr.f32.gmra.mrb[0].mxu0 %v26
  %v116 = vpop.f32.mrb[0].mxu0
  %v117 = vadd.f32 %v48, %v116
  %v118 = vpop.f32.mrb[0].mxu0
  %119 = vdwg.mxu0
  %v120 = vld [vmem:[%s3] sm:$0xff]
  %v121 = vld [vmem:[%s3 + $0x8] sm:$0xff]
  %v122 = vld [vmem:[%s3 + $0x10] sm:$0xff]
  %v123 = vld [vmem:[%s3 + $0x18] sm:$0xff]
  %v124 = vld [vmem:[%s3 + $0x20] sm:$0xff]
  %v125 = vld [vmem:[%s3 + $0x28] sm:$0xff]
  %v126 = vld [vmem:[%s3 + $0x30] sm:$0xff]
  %v127 = vld [vmem:[%s3 + $0x38] sm:$0xff]
  %v128 = vld [vmem:[%s3 + $0x40] sm:$0xff]
  %v129 = vld [vmem:[%s3 + $0x48] sm:$0xff]
  %v130 = vld [vmem:[%s3 + $0x50] sm:$0xff]
  %v131 = vld [vmem:[%s3 + $0x58] sm:$0xff]
  %v132 = vld [vmem:[%s3 + $0x60] sm:$0xff]
  %v133 = vld [vmem:[%s3 + $0x68] sm:$0xff]
  %v134 = vld [vmem:[%s3 + $0x70] sm:$0xff]
  %v135 = vld [vmem:[%s3 + $0x78] sm:$0xff]
  %v136 = vld [vmem:[%s4] sm:$0x1]
  %v138 = vlaneseq
  %v139 = vshrl.u32 %v138, 7
  %v140 = vsub.s32 0, %v139
  %v141 = vrot.slane %v136, %v140
  %143 = vmatprep.subr.mxu0 0.0
  %144 = vmatpush1.msra.mxu0 %v120
  %145 = vmatprep.subr.mxu0 0.0
  %146 = vmatpush1.msra.mxu0 %v121
  %147 = vmatprep.subr.mxu0 0.0
  %148 = vmatpush1.msra.mxu0 %v122
  %149 = vmatprep.subr.mxu0 0.0
  %150 = vmatpush1.msra.mxu0 %v123
  %151 = vmatprep.subr.mxu0 0.0
  %152 = vmatpush1.msra.mxu0 %v124
  %153 = vmatprep.subr.mxu0 0.0
  %154 = vmatpush1.msra.mxu0 %v125
  %155 = vmatprep.subr.mxu0 0.0
  %156 = vmatpush1.msra.mxu0 %v126
  %157 = vmatprep.subr.mxu0 0.0
  %158 = vmatpush1.msra.mxu0 %v127
  %159 = vmatprep.subr.mxu0 0.0
  %160 = vmatpush1.msra.mxu0 %v128
  %161 = vmatprep.subr.mxu0 0.0
  %162 = vmatpush1.msra.mxu0 %v129
  %163 = vmatprep.subr.mxu0 0.0
  %164 = vmatpush1.msra.mxu0 %v130
  %165 = vmatprep.subr.mxu0 0.0
  %166 = vmatpush1.msra.mxu0 %v131
  %167 = vmatprep.subr.mxu0 0.0
  %168 = vmatpush1.msra.mxu0 %v132
  %169 = vmatprep.subr.mxu0 0.0
  %170 = vmatpush1.msra.mxu0 %v133
  %171 = vmatprep.subr.mxu0 0.0
  %172 = vmatpush1.msra.mxu0 %v134
  %173 = vmatprep.subr.mxu0 0.0
  %174 = vmatpush1.msra.mxu0 %v135
  %175 = vmatprep.subr.mxu0 0.0
  %176 = vmatpush1.msra.mxu0 0.0
  %177 = vmatprep.subr.mxu0 0.0
  %178 = vmatpush1.msra.mxu0 0.0
  %179 = vmatprep.subr.mxu0 0.0
  %180 = vmatpush1.msra.mxu0 0.0
  %181 = vmatprep.subr.mxu0 0.0
  %182 = vmatpush1.msra.mxu0 0.0
  %183 = vmatprep.subr.mxu0 0.0
  %184 = vmatpush1.msra.mxu0 0.0
  %185 = vmatprep.subr.mxu0 0.0
  %186 = vmatpush1.msra.mxu0 0.0
  %187 = vmatprep.subr.mxu0 0.0
  %188 = vmatpush1.msra.mxu0 0.0
  %189 = vmatprep.subr.mxu0 0.0
  %190 = vmatpush1.msra.mxu0 0.0
  %191 = vmatprep.subr.mxu0 0.0
  %192 = vmatpush1.msra.mxu0 0.0
  %193 = vmatprep.subr.mxu0 0.0
  %194 = vmatpush1.msra.mxu0 0.0
  %195 = vmatprep.subr.mxu0 0.0
  %196 = vmatpush1.msra.mxu0 0.0
  %197 = vmatprep.subr.mxu0 0.0
  %198 = vmatpush1.msra.mxu0 0.0
  %199 = vmatprep.subr.mxu0 0.0
  %200 = vmatpush1.msra.mxu0 0.0
  %201 = vmatprep.subr.mxu0 0.0
  %202 = vmatpush1.msra.mxu0 0.0
  %203 = vmatprep.subr.mxu0 0.0
  %204 = vmatpush1.msra.mxu0 0.0
  %205 = vmatprep.subr.mxu0 0.0
  %206 = vmatpush1.msra.mxu0 0.0
  %207 = vmatprep.mubr.f32.mxu0 0.0
  %208 = vmatmul.mubr.f32.gmra.mrb[0].mxu0 %v26
  %v209 = vpop.f32.mrb[0].mxu0
  %v210 = vadd.f32 %v141, %v209
  %v211 = vpop.f32.mrb[0].mxu0
  %212 = vdwg.mxu0
  %vm213 = vcmask 1041408
  %v214 = vsel %vm213, %v26, 0.0
  %v215 = vrot.slane %v214, 4
  %v216 = vadd.f32 %v214, %v215
  %v217 = vrot.slane %v216, 2
  %v218 = vadd.f32 %v216, %v217
  %v219 = vrot.slane %v218, 1
  %v220 = vadd.f32 %v218, %v219
  %v221 = vrcp.pop 2.0
  %v222 = vmul.f32 %v220, %v221
  %v223 = vsub.f32 %v26, %v222
  %v224 = vmul.f32 %v223, %v223
  %v225 = vsel %vm213, %v224, 0.0
  %v226 = vrot.slane %v225, 4
  %v227 = vadd.f32 %v225, %v226
  %v228 = vrot.slane %v227, 2
  %v229 = vadd.f32 %v227, %v228
  %v230 = vrot.slane %v229, 1
  %v231 = vadd.f32 %v229, %v230
  %v232 = vmul.f32 %v231, %v221
  %v233 = vadd.f32 %v232, 1e-05
  %v234 = vrsqrt.pop %v233
  %v235 = vmul.f32 %v223, %v234
  %v236 = vld [vmem:[%s5] sm:$0x1]
  %v238 = vlaneseq
  %v239 = vshrl.u32 %v238, 7
  %v240 = vsub.s32 0, %v239
  %v241 = vrot.slane %v236, %v240
  %v243 = vmul.f32 %v235, %v241
  %v244 = vld [vmem:[%s6] sm:$0x1]
  %v246 = vlaneseq
  %v247 = vshrl.u32 %v246, 7
  %v248 = vsub.s32 0, %v247
  %v249 = vrot.slane %v244, %v248
  %v251 = vadd.f32 %v243, %v249
  %252 = vst [vmem:[%s7] sm:$0x3] %v117
  %253 = vst [vmem:[%s7 + $0x2] sm:$0x3] %v210
  %254 = vst [vmem:[%s7 + $0x4] sm:$0x3] %v251
  // Predicated region
  $region30: #{adnet_forward.3} parent=0 // pred_check
    _
  $region31: #{adnet_forward.3} parent=0 // pred_check_branch
    %256 = sbr.rel (0) target = $region33
  $region32: #{adnet_forward.3} parent=0 // pred_region
    _
  $region33: #{adnet_forward.3} parent=0 // pred_fallthru
    _
  // Predicated region
  $region34: #{adnet_forward.3} parent=0 // pred_check
    _
  $region35: #{adnet_forward.3} parent=0 // pred_check_branch
    %258 = sbr.rel (0) target = $region37
  $region36: #{adnet_forward.3} parent=0 // pred_region
    _
  $region37: #{adnet_forward.3} parent=0 // pred_fallthru
    _

// kernel: adnet_forward.2
$region0: #{adnet_forward.2}
  #allocation0 [shape = 'u32[]', space=smem, size = 0x4, offset = 0x4, fixed_abs, tag = 'smem constant byte address 0x4 - core index']
  #allocation1 [shape = 'u32[144,128]{1,0:T(1,128)}', space=vmem, size = 0x12000, scoped, tag = 'internal scratch']
  #allocation2 [shape = 'f32[1,128]{1,0:T(1,128)}', space=vmem, size = 0x200, scoped, tag = 'scratch operand']
  %s0 = inlined_call_operand.vmem [shape: bf16[512,36], index: 0, kind: input, shape index: {}]
  %s1 = inlined_call_operand.vmem [shape: bf16[36,128], index: 1, kind: input, shape index: {}]
  %s2 = inlined_call_operand.vmem [shape: f32[1,128], index: 2, kind: input, shape index: {}]
  %s3 = inlined_call_operand.vmem [shape: f32[2,1,128], index: 3, kind: output, shape index: {}]
  %s4 = sld [smem:[#allocation0]]
  $region53: #{adnet_forward.2} parent=0
    _
  %s6 = ssub.s32 1, %s4
  %s7 = scalar_select 0, %s6, %s4
  loop: start=0, step=1, limit=4
  $region2: #{adnet_forward.2} parent=0 // loop_pre_header
    _
  $region3: #{adnet_forward.2} parent=0 // loop_header
    %s9 = sphi 0, %s13
    %p10 = scmp.ge.s32.totalorder %s9, 4
    %s16 = sphi 0, %s28
    %s17 = sphi 0, %s24
    %s18 = sphi 0, %s16
    %s19 = sphi 0, %s17
    %s20 = sphi 0, %s18
    %s21 = sphi 0, %s19
    %s33 = sphi 0, %s35
    %s36 = sphi 0, %s33
    %s37 = sphi 0, %s36
    %s53 = sphi 0, %s37
    %s57 = sphi 0, %s57
    %s59 = sphi 0, %s57
    %s60 = sphi 0, %s59
    %s74 = sphi 0, %s60
    %s78 = sphi 0, %s78
    %s80 = sphi 0, %s78
    %s81 = sphi 0, %s80
    %s95 = sphi 0, %s81
    %s101 = sphi 0, %s103
    %s104 = sphi 0, %s101
    %s105 = sphi 0, %s104
    %s121 = sphi 0, %s105
  $region4: #{adnet_forward.2} parent=0 // loop_header_branch
    %12 = sbr.rel (%p10) target = $region8
  $region5: #{adnet_forward.2} parent=0 // loop_body
    %s14 = ssub.s32 %s9, 1
    %s15 = ssub.s32 %s9, 2
    %s22 = sadd.s32 1, %s17
    %p23 = scmp.ge.s32.totalorder %s22, 1
    %s24 = scalar_select %p23, 0, %s22
    %s25 = sadd.s32 1, %s16
    %s26 = scalar_select %p23, %s25, %s16
    %p27 = scmp.ge.s32.totalorder %s26, 2
    %s28 = scalar_select %p27, 0, %s26
    %s29 = sadd.s32 %s16, %s17
    %s30 = sadd.s32 %s28, %s24
    %s31 = ssub.s32 %s29, %s30
    %p32 = scmp.eq.s32.totalorder %s31, 0
    %s34 = sadd.s32 %s33, 1
    %s35 = scalar_select %p32, %s33, %s34
    %p38 = pneg %p32
    %p39 = scmp.eq.s32.totalorder %s9, 1
    %p40 = por %p38, %p39
    %p41 = scmp.ne.s32.totalorder %s33, %s36
    %p42 = scmp.eq.s32.totalorder %s9, 0
    %p43 = por %p41, %p42
    %p44 = scmp.ne.s32.totalorder %s33, %s36
    %p45 = scmp.eq.s32.totalorder %s14, 1
    %p46 = por %p44, %p45
    %p47 = scmp.ne.s32.totalorder %s36, %s37
    %p48 = scmp.eq.s32.totalorder %s14, 0
    %p49 = por %p47, %p48
    %p50 = scmp.ne.s32.totalorder %s36, %s37
    %p51 = scmp.eq.s32.totalorder %s15, 1
    %p52 = por %p50, %p51
    %p54 = scmp.ne.s32.totalorder %s37, %s53
    %p55 = scmp.eq.s32.totalorder %s15, 0
    %p56 = por %p54, %p55
    %s58 = sadd.s32 %s57, 1
    %p61 = scmp.eq.s32.totalorder %s9, 1
    %p62 = scmp.ne.s32.totalorder %s57, %s59
    %p63 = scmp.eq.s32.totalorder %s9, 0
    %p64 = por %p62, %p63
    %p65 = scmp.ne.s32.totalorder %s57, %s59
    %p66 = scmp.eq.s32.totalorder %s14, 1
    %p67 = por %p65, %p66
    %p68 = scmp.ne.s32.totalorder %s59, %s60
    %p69 = scmp.eq.s32.totalorder %s14, 0
    %p70 = por %p68, %p69
    %p71 = scmp.ne.s32.totalorder %s59, %s60
    %p72 = scmp.eq.s32.totalorder %s15, 1
    %p73 = por %p71, %p72
    %p75 = scmp.ne.s32.totalorder %s60, %s74
    %p76 = scmp.eq.s32.totalorder %s15, 0
    %p77 = por %p75, %p76
    %s79 = sadd.s32 %s78, 1
    %p82 = scmp.eq.s32.totalorder %s9, 1
    %p83 = scmp.ne.s32.totalorder %s78, %s80
    %p84 = scmp.eq.s32.totalorder %s9, 0
    %p85 = por %p83, %p84
    %p86 = scmp.ne.s32.totalorder %s78, %s80
    %p87 = scmp.eq.s32.totalorder %s14, 1
    %p88 = por %p86, %p87
    %p89 = scmp.ne.s32.totalorder %s80, %s81
    %p90 = scmp.eq.s32.totalorder %s14, 0
    %p91 = por %p89, %p90
    %p92 = scmp.ne.s32.totalorder %s80, %s81
    %p93 = scmp.eq.s32.totalorder %s15, 1
    %p94 = por %p92, %p93
    %p96 = scmp.ne.s32.totalorder %s81, %s95
    %p97 = scmp.eq.s32.totalorder %s15, 0
    %p98 = por %p96, %p97
    %s99 = ssub.s32 %s16, %s28
    %p100 = scmp.eq.s32.totalorder %s99, 0
    %s102 = sadd.s32 %s101, 1
    %s103 = scalar_select %p100, %s101, %s102
    %p106 = pneg %p100
    %p107 = scmp.eq.s32.totalorder %s9, 1
    %p108 = por %p106, %p107
    %p109 = scmp.ne.s32.totalorder %s101, %s104
    %p110 = scmp.eq.s32.totalorder %s9, 0
    %p111 = por %p109, %p110
    %p112 = scmp.ne.s32.totalorder %s101, %s104
    %p113 = scmp.eq.s32.totalorder %s14, 1
    %p114 = por %p112, %p113
    %p115 = scmp.ne.s32.totalorder %s104, %s105
    %p116 = scmp.eq.s32.totalorder %s14, 0
    %p117 = por %p115, %p116
    %p118 = scmp.ne.s32.totalorder %s104, %s105
    %p119 = scmp.eq.s32.totalorder %s15, 1
    %p120 = por %p118, %p119
    %p122 = scmp.ne.s32.totalorder %s105, %s121
    %p123 = scmp.eq.s32.totalorder %s15, 0
    %p124 = por %p122, %p123
    %p125 = scmp.le.s32.totalorder 1, %s9
    %p126 = scmp.lt.s32.totalorder %s9, 3
    %p127 = pnand %p125, %p126
    %p128 = pneg %p127
    // Predicated region
    $region9: #{adnet_forward.2} parent=5 // pred_check
      _
    $region10: #{adnet_forward.2} parent=5 // pred_check_branch
      %130 = sbr.rel (%p127) target = $region12
    $region11: #{adnet_forward.2} parent=5 // pred_region
      %s131 = ssub.s32 %s9, 1
      // Predicated region
      $region13: #{adnet_forward.2} parent=11 // pred_check
        %p132 = pneg %p70
      $region14: #{adnet_forward.2} parent=11 // pred_check_branch
        %134 = sbr.rel (%p132) target = $region16
      $region15: #{adnet_forward.2} parent=11 // pred_region
        _
      $region16: #{adnet_forward.2} parent=11 // pred_fallthru
        _
      // Predicated region
      $region17: #{adnet_forward.2} parent=11 // pred_check
        %p135 = pneg %p91
      $region18: #{adnet_forward.2} parent=11 // pred_check_branch
        %137 = sbr.rel (%p135) target = $region20
      $region19: #{adnet_forward.2} parent=11 // pred_region
        _
      $region20: #{adnet_forward.2} parent=11 // pred_fallthru
        _
    $region12: #{adnet_forward.2} parent=5 // pred_fallthru
      _
    %p138 = scmp.lt.s32.totalorder %s9, 2
    // Predicated region
    $region21: #{adnet_forward.2} parent=5 // pred_check
      %p139 = pneg %p138
    $region22: #{adnet_forward.2} parent=5 // pred_check_branch
      %141 = sbr.rel (%p139) target = $region24
    $region23: #{adnet_forward.2} parent=5 // pred_region
      // Predicated region
      $region25: #{adnet_forward.2} parent=23 // pred_check
        %p142 = pneg %p43
      $region26: #{adnet_forward.2} parent=23 // pred_check_branch
        %144 = sbr.rel (%p142) target = $region28
      $region27: #{adnet_forward.2} parent=23 // pred_region
        %s145 = sadd.s32 %s16, %s17
        %s146 = smul.u32 32, %s145
        %p147 = scmp.lt.s32.totalorder %s146, 63
        %s148 = scalar_select %p147, %s146, 63
        %s149 = smul.addr %s148, 4
        %s150 = scalar_lea.vmem %s0, %s149
        %s151 = sadd.s32 %s16, %s17
        %s152 = smul.u32 32, %s151
      $region28: #{adnet_forward.2} parent=23 // pred_fallthru
        _
    $region24: #{adnet_forward.2} parent=5 // pred_fallthru
      _
    %p153 = scmp.le.s32.totalorder 1, %s9
    %p154 = scmp.lt.s32.totalorder %s9, 3
    %p155 = pnand %p153, %p154
    %p156 = pneg %p155
    // Predicated region
    $region29: #{adnet_forward.2} parent=5 // pred_check
      _
    $region30: #{adnet_forward.2} parent=5 // pred_check_branch
      %158 = sbr.rel (%p155) target = $region32
    $region31: #{adnet_forward.2} parent=5 // pred_region
      %s159 = ssub.s32 %s9, 1
      %s160 = sadd.s32 %s18, %s19
      %s161 = smul.u32 32, %s160
      %p162 = scmp.lt.s32.totalorder %s161, 63
      %s163 = scalar_select %p162, %s161, 63
      %s164 = smul.addr %s163, 4
      %s165 = scalar_lea.vmem %s0, %s164
      %p166 = pneg %p49
      %p167 = pneg %p46
      %p168 = pneg %p70
      %p169 = pneg %p67
      %p170 = pneg %p91
      %p171 = pneg %p88
      %p172 = pneg %p117
      %p173 = pneg %p114
      %p174 = scmp.lt.s32.totalorder %s18, 1
      %s175 = scalar_select %p174, %s18, 1
      %s176 = scalar_lea.vmem %s3, %s175
      %s177 = sadd.s32 %s18, %s19
      %s178 = smul.u32 32, %s177
      %p179 = scmp.lt.s32.totalorder %s178, 63
      %s180 = scalar_select %p179, %s178, 63
      %s181 = smul.addr %s180, 4
      %s182 = scalar_lea.vmem %s0, %s181
      %s183 = sadd.s32 %s18, %s19
      %s184 = smul.u32 32, %s183
      %p185 = scmp.lt.s32.totalorder %s18, 1
      %s186 = scalar_select %p185, %s18, 1
      %s187 = scalar_lea.vmem %s3, %s186
      %p189 = scmp.eq.s32.totalorder %s19, 0
      // Predicated region
      $region33: #{adnet_forward.2} parent=31 // pred_check
        %p190 = pneg %p189
      $region34: #{adnet_forward.2} parent=31 // pred_check_branch
        %192 = sbr.rel (%p190) target = $region36
      $region35: #{adnet_forward.2} parent=31 // pred_region
        %193 = vst [vmem:[#allocation2] sm:$0x1] 0.0
      $region36: #{adnet_forward.2} parent=31 // pred_fallthru
        _
      %v194 = vld [vmem:[%s182] sm:$0xf]
      %v195 = vld [vmem:[%s182 + $0x4] sm:$0xf]
      %v196 = vld [vmem:[%s182 + $0x8] sm:$0xf]
      %v197 = vld [vmem:[%s182 + $0xc] sm:$0xf]
      %v198 = vld [vmem:[%s182 + $0x10] sm:$0xf]
      %v199 = vld [vmem:[%s182 + $0x14] sm:$0xf]
      %v200 = vld [vmem:[%s182 + $0x18] sm:$0xf]
      %v201 = vld [vmem:[%s182 + $0x1c] sm:$0xf]
      %v202 = vld [vmem:[%s182 + $0x20] sm:$0xf]
      %v203 = vld [vmem:[%s182 + $0x24] sm:$0xf]
      %v204 = vld [vmem:[%s182 + $0x28] sm:$0xf]
      %v205 = vld [vmem:[%s182 + $0x2c] sm:$0xf]
      %v206 = vld [vmem:[%s182 + $0x30] sm:$0xf]
      %v207 = vld [vmem:[%s182 + $0x34] sm:$0xf]
      %v208 = vld [vmem:[%s182 + $0x38] sm:$0xf]
      %v209 = vld [vmem:[%s182 + $0x3c] sm:$0xf]
      %v210 = vld [vmem:[%s182 + $0x40] sm:$0xf]
      %v211 = vld [vmem:[%s182 + $0x44] sm:$0xf]
      %v212 = vld [vmem:[%s182 + $0x48] sm:$0xf]
      %v213 = vld [vmem:[%s182 + $0x4c] sm:$0xf]
      %v214 = vld [vmem:[%s182 + $0x50] sm:$0xf]
      %v215 = vld [vmem:[%s182 + $0x54] sm:$0xf]
      %v216 = vld [vmem:[%s182 + $0x58] sm:$0xf]
      %v217 = vld [vmem:[%s182 + $0x5c] sm:$0xf]
      %v218 = vld [vmem:[%s182 + $0x60] sm:$0xf]
      %v219 = vld [vmem:[%s182 + $0x64] sm:$0xf]
      %v220 = vld [vmem:[%s182 + $0x68] sm:$0xf]
      %v221 = vld [vmem:[%s182 + $0x6c] sm:$0xf]
      %v222 = vld [vmem:[%s182 + $0x70] sm:$0xf]
      %v223 = vld [vmem:[%s182 + $0x74] sm:$0xf]
      %v224 = vld [vmem:[%s182 + $0x78] sm:$0xf]
      %v225 = vld [vmem:[%s182 + $0x7c] sm:$0xf]
      %v226 = vld [vmem:[%s1] sm:$0xf]
      %v227 = vld [vmem:[%s1 + $0x4] sm:$0xf]
      %v228 = vld [vmem:[%s1 + $0x8] sm:$0xf]
      %v229 = vld [vmem:[%s1 + $0xc] sm:$0xf]
      %v230 = vld [vmem:[%s1 + $0x10] sm:$0x3]
      %v231 = vld [vmem:[%s2] sm:$0x1]
      %v233 = vlaneseq
      %v234 = vshrl.u32 %v233, 7
      %v235 = vsub.s32 0, %v234
      %v236 = vrot.slane %v231, %v235
      %v270 = vunpack.c.l.b16 %v194
      %v271 = vunpack.c.l.b16 %v195
      %v272 = vunpack.c.l.b16 %v196
      %v273 = vunpack.c.l.b16 %v197
      %v274 = vunpack.c.l.b16 %v198
      %v275 = vunpack.c.l.b16 %v199
      %v276 = vunpack.c.l.b16 %v200
      %v277 = vunpack.c.l.b16 %v201
      %v278 = vunpack.c.l.b16 %v202
      %v279 = vunpack.c.l.b16 %v203
      %v280 = vunpack.c.l.b16 %v204
      %v281 = vunpack.c.l.b16 %v205
      %v282 = vunpack.c.l.b16 %v206
      %v283 = vunpack.c.l.b16 %v207
      %v284 = vunpack.c.l.b16 %v208
      %v285 = vunpack.c.l.b16 %v209
      %v286 = vunpack.c.l.b16 %v210
      %v287 = vunpack.c.l.b16 %v211
      %v288 = vunpack.c.l.b16 %v212
      %v289 = vunpack.c.l.b16 %v213
      %v290 = vunpack.c.l.b16 %v214
      %v291 = vunpack.c.l.b16 %v215
      %v292 = vunpack.c.l.b16 %v216
      %v293 = vunpack.c.l.b16 %v217
      %v294 = vunpack.c.l.b16 %v218
      %v295 = vunpack.c.l.b16 %v219
      %v296 = vunpack.c.l.b16 %v220
      %v297 = vunpack.c.l.b16 %v221
      %v298 = vunpack.c.l.b16 %v222
      %v299 = vunpack.c.l.b16 %v223
      %v300 = vunpack.c.l.b16 %v224
      %v301 = vunpack.c.l.b16 %v225
      %v302 = vpack.c.b16 %v271, %v270
      %v303 = vpack.c.b16 %v273, %v272
      %v304 = vpack.c.b16 %v275, %v274
      %v305 = vpack.c.b16 %v277, %v276
      %v306 = vpack.c.b16 %v279, %v278
      %v307 = vpack.c.b16 %v281, %v280
      %v308 = vpack.c.b16 %v283, %v282
      %v309 = vpack.c.b16 %v285, %v284
      %v310 = vpack.c.b16 %v287, %v286
      %v311 = vpack.c.b16 %v289, %v288
      %v312 = vpack.c.b16 %v291, %v290
      %v313 = vpack.c.b16 %v293, %v292
      %v314 = vpack.c.b16 %v295, %v294
      %v315 = vpack.c.b16 %v297, %v296
      %v316 = vpack.c.b16 %v299, %v298
      %v317 = vpack.c.b16 %v301, %v300
      %v323 = vunpack.c.l.b16 %v226
      %v324 = vunpack.c.l.b16 %v227
      %v325 = vunpack.c.l.b16 %v228
      %v326 = vunpack.c.l.b16 %v229
      %v327 = vunpack.c.l.b16 %v230
      %v328 = vpack.c.b16 %v324, %v323
      %v329 = vpack.c.b16 %v326, %v325
      %v330 = vpack.c.b16 %v327, %v327
      %vm333 = vcmask 293888
      %v335 = vsel %vm333, %v302, 0
      %v338 = vsel %vm333, %v303, 0
      %v341 = vsel %vm333, %v304, 0
      %v344 = vsel %vm333, %v305, 0
      %v347 = vsel %vm333, %v306, 0
      %v350 = vsel %vm333, %v307, 0
      %v353 = vsel %vm333, %v308, 0
      %v356 = vsel %vm333, %v309, 0
      %v359 = vsel %vm333, %v310, 0
      %v362 = vsel %vm333, %v311, 0
      %v365 = vsel %vm333, %v312, 0
      %v368 = vsel %vm333, %v313, 0
      %v371 = vsel %vm333, %v314, 0
      %v374 = vsel %vm333, %v315, 0
      %v377 = vsel %vm333, %v316, 0
      %v380 = vsel %vm333, %v317, 0
      %vm382 = vcmask 1041408
      %v384 = vsel %vm382, %v330, 0
      %386 = vmatprep.subr.bf16.mxu0 0
      %387 = vmatpush1.bf16.msra.mxu0 %v328
      %388 = vmatprep.subr.bf16.mxu0 0
      %389 = vmatpush1.bf16.msra.mxu0 %v329
      %390 = vmatprep.subr.bf16.mxu0 0
      %391 = vmatpush1.bf16.msra.mxu0 %v384
      %392 = vmatprep.subr.bf16.mxu0 0
      %393 = vmatpush1.bf16.msra.mxu0 0
      %394 = vmatprep.subr.bf16.mxu0 0
      %395 = vmatpush1.bf16.msra.mxu0 0
      %396 = vmatprep.subr.bf16.mxu0 0
      %397 = vmatpush1.bf16.msra.mxu0 0
      %398 = vmatprep.subr.bf16.mxu0 0
      %399 = vmatpush1.bf16.msra.mxu0 0
      %400 = vmatprep.subr.bf16.mxu0 0
      %401 = vmatpush1.bf16.msra.mxu0 0
      %402 = vmatprep.subr.bf16.mxu0 0
      %403 = vmatpush1.bf16.msra.mxu0 0
      %404 = vmatprep.subr.bf16.mxu0 0
      %405 = vmatpush1.bf16.msra.mxu0 0
      %406 = vmatprep.subr.bf16.mxu0 0
      %407 = vmatpush1.bf16.msra.mxu0 0
      %408 = vmatprep.subr.bf16.mxu0 0
      %409 = vmatpush1.bf16.msra.mxu0 0
      %410 = vmatprep.subr.bf16.mxu0 0
      %411 = vmatpush1.bf16.msra.mxu0 0
      %412 = vmatprep.subr.bf16.mxu0 0
      %413 = vmatpush1.bf16.msra.mxu0 0
      %414 = vmatprep.subr.bf16.mxu0 0
      %415 = vmatpush1.bf16.msra.mxu0 0
      %416 = vmatprep.subr.bf16.mxu0 0
      %417 = vmatpush1.bf16.msra.mxu0 0
      %418 = vmatprep.mubr.bf16.mxu0 0
      %419 = vmatmul.mubr.bf16.gmra.mrb[0].mxu0 %v335
      %v420 = vpop.f32.mrb[0].mxu0
      %v421 = vadd.f32 %v236, %v420
      %v422 = vpop.f32.mrb[0].mxu0
      %v423 = vpop.f32.mrb[0].mxu0
      %v424 = vadd.f32 %v236, %v423
      %v425 = vpop.f32.mrb[0].mxu0
      %426 = vmatprep.mubr.bf16.mxu0 0
      %427 = vmatmul.mubr.bf16.gmra.mrb[0].mxu0 %v338
      %v428 = vpop.f32.mrb[0].mxu0
      %v429 = vadd.f32 %v236, %v428
      %v430 = vpop.f32.mrb[0].mxu0
      %v431 = vpop.f32.mrb[0].mxu0
      %v432 = vadd.f32 %v236, %v431
      %v433 = vpop.f32.mrb[0].mxu0
      %434 = vmatprep.mubr.bf16.mxu0 0
      %435 = vmatmul.mubr.bf16.gmra.mrb[0].mxu0 %v341
      %v436 = vpop.f32.mrb[0].mxu0
      %v437 = vadd.f32 %v236, %v436
      %v438 = vpop.f32.mrb[0].mxu0
      %v439 = vpop.f32.mrb[0].mxu0
      %v440 = vadd.f32 %v236, %v439
      %v441 = vpop.f32.mrb[0].mxu0
      %442 = vmatprep.mubr.bf16.mxu0 0
      %443 = vmatmul.mubr.bf16.gmra.mrb[0].mxu0 %v344
      %v444 = vpop.f32.mrb[0].mxu0
      %v445 = vadd.f32 %v236, %v444
      %v446 = vpop.f32.mrb[0].mxu0
      %v447 = vpop.f32.mrb[0].mxu0
      %v448 = vadd.f32 %v236, %v447
      %v449 = vpop.f32.mrb[0].mxu0
      %450 = vmatprep.mubr.bf16.mxu0 0
      %451 = vmatmul.mubr.bf16.gmra.mrb[0].mxu0 %v347
      %v452 = vpop.f32.mrb[0].mxu0
      %v453 = vadd.f32 %v236, %v452
      %v454 = vpop.f32.mrb[0].mxu0
      %v455 = vpop.f32.mrb[0].mxu0
      %v456 = vadd.f32 %v236, %v455
      %v457 = vpop.f32.mrb[0].mxu0
      %458 = vmatprep.mubr.bf16.mxu0 0
      %459 = vmatmul.mubr.bf16.gmra.mrb[0].mxu0 %v350
      %v460 = vpop.f32.mrb[0].mxu0
      %v461 = vadd.f32 %v236, %v460
      %v462 = vpop.f32.mrb[0].mxu0
      %v463 = vpop.f32.mrb[0].mxu0
      %v464 = vadd.f32 %v236, %v463
      %v465 = vpop.f32.mrb[0].mxu0
      %466 = vmatprep.mubr.bf16.mxu0 0
      %467 = vmatmul.mubr.bf16.gmra.mrb[0].mxu0 %v353
      %v468 = vpop.f32.mrb[0].mxu0
      %v469 = vadd.f32 %v236, %v468
      %v470 = vpop.f32.mrb[0].mxu0
      %v471 = vpop.f32.mrb[0].mxu0
      %v472 = vadd.f32 %v236, %v471
      %v473 = vpop.f32.mrb[0].mxu0
      %474 = vmatprep.mubr.bf16.mxu0 0
      %475 = vmatmul.mubr.bf16.gmra.mrb[0].mxu0 %v356
      %v476 = vpop.f32.mrb[0].mxu0
      %v477 = vadd.f32 %v236, %v476
      %v478 = vpop.f32.mrb[0].mxu0
      %v479 = vpop.f32.mrb[0].mxu0
      %v480 = vadd.f32 %v236, %v479
      %v481 = vpop.f32.mrb[0].mxu0
      %482 = vmatprep.mubr.bf16.mxu0 0
      %483 = vmatmul.mubr.bf16.gmra.mrb[0].mxu0 %v359
      %v484 = vpop.f32.mrb[0].mxu0
      %v485 = vadd.f32 %v236, %v484
      %v486 = vpop.f32.mrb[0].mxu0
      %v487 = vpop.f32.mrb[0].mxu0
      %v488 = vadd.f32 %v236, %v487
      %v489 = vpop.f32.mrb[0].mxu0
      %490 = vmatprep.mubr.bf16.mxu0 0
      %491 = vmatmul.mubr.bf16.gmra.mrb[0].mxu0 %v362
      %v492 = vpop.f32.mrb[0].mxu0
      %v493 = vadd.f32 %v236, %v492
      %v494 = vpop.f32.mrb[0].mxu0
      %v495 = vpop.f32.mrb[0].mxu0
      %v496 = vadd.f32 %v236, %v495
      %v497 = vpop.f32.mrb[0].mxu0
      %498 = vmatprep.mubr.bf16.mxu0 0
      %499 = vmatmul.mubr.bf16.gmra.mrb[0].mxu0 %v365
      %v500 = vpop.f32.mrb[0].mxu0
      %v501 = vadd.f32 %v236, %v500
      %v502 = vpop.f32.mrb[0].mxu0
      %v503 = vpop.f32.mrb[0].mxu0
      %v504 = vadd.f32 %v236, %v503
      %v505 = vpop.f32.mrb[0].mxu0
      %506 = vmatprep.mubr.bf16.mxu0 0
      %507 = vmatmul.mubr.bf16.gmra.mrb[0].mxu0 %v368
      %v508 = vpop.f32.mrb[0].mxu0
      %v509 = vadd.f32 %v236, %v508
      %v510 = vpop.f32.mrb[0].mxu0
      %v511 = vpop.f32.mrb[0].mxu0
      %v512 = vadd.f32 %v236, %v511
      %v513 = vpop.f32.mrb[0].mxu0
      %514 = vmatprep.mubr.bf16.mxu0 0
      %515 = vmatmul.mubr.bf16.gmra.mrb[0].mxu0 %v371
      %v516 = vpop.f32.mrb[0].mxu0
      %v517 = vadd.f32 %v236, %v516
      %v518 = vpop.f32.mrb[0].mxu0
      %v519 = vpop.f32.mrb[0].mxu0
      %v520 = vadd.f32 %v236, %v519
      %v521 = vpop.f32.mrb[0].mxu0
      %522 = vmatprep.mubr.bf16.mxu0 0
      %523 = vmatmul.mubr.bf16.gmra.mrb[0].mxu0 %v374
      %v524 = vpop.f32.mrb[0].mxu0
      %v525 = vadd.f32 %v236, %v524
      %v526 = vpop.f32.mrb[0].mxu0
      %v527 = vpop.f32.mrb[0].mxu0
      %v528 = vadd.f32 %v236, %v527
      %v529 = vpop.f32.mrb[0].mxu0
      %530 = vmatprep.mubr.bf16.mxu0 0
      %531 = vmatmul.mubr.bf16.gmra.mrb[0].mxu0 %v377
      %v532 = vpop.f32.mrb[0].mxu0
      %v533 = vadd.f32 %v236, %v532
      %v534 = vpop.f32.mrb[0].mxu0
      %v535 = vpop.f32.mrb[0].mxu0
      %v536 = vadd.f32 %v236, %v535
      %v537 = vpop.f32.mrb[0].mxu0
      %538 = vmatprep.mubr.bf16.mxu0 0
      %539 = vmatmul.mubr.bf16.gmra.mrb[0].mxu0 %v380
      %v540 = vpop.f32.mrb[0].mxu0
      %v541 = vadd.f32 %v236, %v540
      %v542 = vpop.f32.mrb[0].mxu0
      %v543 = vpop.f32.mrb[0].mxu0
      %v544 = vadd.f32 %v236, %v543
      %v545 = vpop.f32.mrb[0].mxu0
      %546 = vdwg.mxu0
      %v547 = vmax.f32 %v421, 0.0
      %v548 = vmax.f32 %v424, 0.0
      %v549 = vmax.f32 %v429, 0.0
      %v550 = vmax.f32 %v432, 0.0
      %v551 = vmax.f32 %v437, 0.0
      %v552 = vmax.f32 %v440, 0.0
      %v553 = vmax.f32 %v445, 0.0
      %v554 = vmax.f32 %v448, 0.0
      %v555 = vmax.f32 %v453, 0.0
      %v556 = vmax.f32 %v456, 0.0
      %v557 = vmax.f32 %v461, 0.0
      %v558 = vmax.f32 %v464, 0.0
      %v559 = vmax.f32 %v469, 0.0
      %v560 = vmax.f32 %v472, 0.0
      %v561 = vmax.f32 %v477, 0.0
      %v562 = vmax.f32 %v480, 0.0
      %v563 = vmax.f32 %v485, 0.0
      %v564 = vmax.f32 %v488, 0.0
      %v565 = vmax.f32 %v493, 0.0
      %v566 = vmax.f32 %v496, 0.0
      %v567 = vmax.f32 %v501, 0.0
      %v568 = vmax.f32 %v504, 0.0
      %v569 = vmax.f32 %v509, 0.0
      %v570 = vmax.f32 %v512, 0.0
      %v571 = vmax.f32 %v517, 0.0
      %v572 = vmax.f32 %v520, 0.0
      %v573 = vmax.f32 %v525, 0.0
      %v574 = vmax.f32 %v528, 0.0
      %v575 = vmax.f32 %v533, 0.0
      %v576 = vmax.f32 %v536, 0.0
      %v577 = vmax.f32 %v541, 0.0
      %v578 = vmax.f32 %v544, 0.0
      %v579 = vld [vmem:[#allocation2] sm:$0x1]
      %v580 = vadd.f32 %v547, %v548
      %v581 = vadd.f32 %v580, %v549
      %v582 = vadd.f32 %v581, %v550
      %v583 = vadd.f32 %v582, %v551
      %v584 = vadd.f32 %v583, %v552
      %v585 = vadd.f32 %v584, %v553
      %v586 = vadd.f32 %v585, %v554
      %v587 = vadd.f32 %v586, %v555
      %v588 = vadd.f32 %v587, %v556
      %v589 = vadd.f32 %v588, %v557
      %v590 = vadd.f32 %v589, %v558
      %v591 = vadd.f32 %v590, %v559
      %v592 = vadd.f32 %v591, %v560
      %v593 = vadd.f32 %v592, %v561
      %v594 = vadd.f32 %v593, %v562
      %v595 = vadd.f32 %v594, %v563
      %v596 = vadd.f32 %v595, %v564
      %v597 = vadd.f32 %v596, %v565
      %v598 = vadd.f32 %v597, %v566
      %v599 = vadd.f32 %v598, %v567
      %v600 = vadd.f32 %v599, %v568
      %v601 = vadd.f32 %v600, %v569
      %v602 = vadd.f32 %v601, %v570
      %v603 = vadd.f32 %v602, %v571
      %v604 = vadd.f32 %v603, %v572
      %v605 = vadd.f32 %v604, %v573
      %v606 = vadd.f32 %v605, %v574
      %v607 = vadd.f32 %v606, %v575
      %v608 = vadd.f32 %v607, %v576
      %v609 = vadd.f32 %v608, %v577
      %v610 = vadd.f32 %v609, %v578
      %v611 = vrot.slane %v610, 4
      %v612 = vadd.f32 %v610, %v611
      %v613 = vrot.slane %v612, 2
      %v614 = vadd.f32 %v612, %v613
      %v615 = vrot.slane %v614, 1
      %v616 = vadd.f32 %v614, %v615
      %v617 = vadd.f32 %v579, %v616
      %618 = vst [vmem:[#allocation2] sm:$0x1] %v617
      // Predicated region
      $region37: #{adnet_forward.2} parent=31 // pred_check
        %p619 = pneg %p189
      $region38: #{adnet_forward.2} parent=31 // pred_check_branch
        %621 = sbr.rel (%p619) target = $region40
      $region39: #{adnet_forward.2} parent=31 // pred_region
        %v622 = vld [vmem:[#allocation2] sm:$0x1]
        %v623 = vmul.f32 %v622, 0.00390625
        %624 = vst [vmem:[%s187] sm:$0x1] %v623
      $region40: #{adnet_forward.2} parent=31 // pred_fallthru
        _
      %p625 = scmp.lt.s32.totalorder %s18, 1
      %s626 = scalar_select %p625, %s18, 1
      %s627 = scalar_lea.vmem %s3, %s626
      // Predicated region
      $region41: #{adnet_forward.2} parent=31 // pred_check
        %p628 = pneg %p114
      $region42: #{adnet_forward.2} parent=31 // pred_check_branch
        %630 = sbr.rel (%p628) target = $region44
      $region43: #{adnet_forward.2} parent=31 // pred_region
        _
      $region44: #{adnet_forward.2} parent=31 // pred_fallthru
        _
    $region32: #{adnet_forward.2} parent=5 // pred_fallthru
      _
    %p631 = scmp.le.s32.totalorder 2, %s9
    // Predicated region
    $region45: #{adnet_forward.2} parent=5 // pred_check
      %p632 = pneg %p631
    $region46: #{adnet_forward.2} parent=5 // pred_check_branch
      %634 = sbr.rel (%p632) target = $region48
    $region47: #{adnet_forward.2} parent=5 // pred_region
      %s635 = ssub.s32 %s9, 2
      // Predicated region
      $region49: #{adnet_forward.2} parent=47 // pred_check
        %p636 = pneg %p120
      $region50: #{adnet_forward.2} parent=47 // pred_check_branch
        %638 = sbr.rel (%p636) target = $region52
      $region51: #{adnet_forward.2} parent=47 // pred_region
        %p639 = scmp.lt.s32.totalorder %s20, 1
        %s640 = scalar_select %p639, %s20, 1
        %s641 = scalar_lea.vmem %s3, %s640
      $region52: #{adnet_forward.2} parent=47 // pred_fallthru
        _
    $region48: #{adnet_forward.2} parent=5 // pred_fallthru
      _
  $region6: #{adnet_forward.2} parent=0 // loop_footer
    %s13 = sadd.s32 1, %s9
  $region7: #{adnet_forward.2} parent=0 // loop_footer_branch
    %8 = sbr.rel target = $region3
  $region8: #{adnet_forward.2} parent=0 // loop_exit
    _

</llo_original>
